<compile_context>
chip_gen: v5e
topology: v5e:2x2
jax: 0.10.0
libtpu: 0.0.40
codegen_flags: <defaults>
</compile_context>

<pallas_src>
import functools

import jax
import jax.numpy as jnp
from jax.experimental import pallas as pl
from jax.experimental.pallas import tpu as pltpu

_LANES = 128
_SUBLANES = 8
_ACC_ROWS = 64               # (64,128)xf32 accumulator = 8 vregs / 32 KiB
_MAX_TILE_ROWS = 4096        # 4096x128xf32 = 2 MiB per input block per step
_VMEM_LIMIT = 32 * 1024 * 1024


def _cdiv(a, b):
    return -(-a // b)


def _round_up(a, b):
    return _cdiv(a, b) * b


def _num_splits():
    # 2-way grid split only on multi-TensorCore chips (v7x); on single-TC
    # v5e/v6e a split is just a serial loop with an extra epilogue.
    try:
        kind = jax.devices()[0].device_kind.lower()
    except Exception:
        return 1
    return 2 if "v7" in kind else 1


_NSPLIT = _num_splits()


def _stable_bce(y, t):
    # Matches torch.nn.BCEWithLogitsLoss (no weight / pos_weight):
    #   l = max(y, 0) - y*t + log(1 + exp(-|y|))
    return jnp.maximum(y, 0.0) - y * t + jnp.log1p(jnp.exp(-jnp.abs(y)))


def _accumulate(n_ref, out_ref, acc_ref, loss):
    """Fold one (tile_rows, 128) loss tile into the resident accumulator."""
    s = pl.program_id(0)          # parallel split
    i = pl.program_id(1)          # reduction step within split
    k = pl.num_programs(1)
    tile_rows = loss.shape[0]
    acc_rows = acc_ref.shape[0]
    tile_elems = tile_rows * _LANES

    @pl.when(i == 0)
    def _():
        acc_ref[...] = jnp.zeros_like(acc_ref)

    # int32 scalar math; wrapper asserts n + grid overshoot < 2**31.
    base_elem = (s * k + i) * tile_elems
    rem = n_ref[0] - base_elem            # valid elements at/after this tile

    def fold(x):
        return x.reshape(tile_rows // acc_rows, acc_rows, _LANES).sum(axis=0)

    @pl.when(rem >= tile_elems)           # steady state: pure unmasked VPU adds
    def _():
        acc_ref[...] += fold(loss)

    @pl.when(rem < tile_elems)            # boundary tile(s): iota validity mask
    def _():
        row_ids = jax.lax.broadcasted_iota(jnp.int32, loss.shape, 0)
        lane_ids = jax.lax.broadcasted_iota(jnp.int32, loss.shape, 1)
        valid = row_ids * _LANES + lane_ids < rem
        acc_ref[...] += fold(jnp.where(valid, loss, 0.0))

    @pl.when(i == k - 1)                  # per-split epilogue: fold to (8, 128)
    def _():
        out_ref[...] = acc_ref[...].reshape(
            acc_rows // _SUBLANES, _SUBLANES, _LANES).sum(axis=0)


def _bce_kernel(n_ref, y_ref, t_ref, out_ref, acc_ref):
    y = y_ref[...].astype(jnp.float32)
    t = t_ref[...].astype(jnp.float32)
    _accumulate(n_ref, out_ref, acc_ref, _stable_bce(y, t))


def _make_const_label_kernel(label):
    t = float(label)   # baked-in scalar constant: no second HBM stream

    def kernel(n_ref, y_ref, out_ref, acc_ref):
        y = y_ref[...].astype(jnp.float32)
        _accumulate(n_ref, out_ref, acc_ref, _stable_bce(y, t))

    return kernel


def _to_lane_slab(x):
    """Flatten to (rows, 128); copy-free (pure reshape) when x.size % 128 == 0."""
    flat = x.reshape(-1)
    n = flat.shape[0]
    rem = (-n) % _LANES
    if rem:
        flat = jnp.pad(flat, (0, rem))    # <=127 padded elems, masked in-kernel
    rows = (n + rem) // _LANES
    return flat.reshape(rows, _LANES), rows


def _launch(kernel, inputs_2d, rows, n, nsplit):
    rows_per_split = _cdiv(rows, nsplit)
    if rows_per_split <= _ACC_ROWS:
        tile_rows = _round_up(rows_per_split, _SUBLANES)
    else:
        tile_rows = min(_MAX_TILE_ROWS, _round_up(rows_per_split, _ACC_ROWS))
    acc_rows = min(tile_rows, _ACC_ROWS)
    total_blocks = _cdiv(rows, tile_rows)
    k_steps = _cdiv(total_blocks, nsplit)

    # Clamp so no block starts past the array; the element-count mask zeroes
    # any duplicated coverage introduced by the clamp.
    def in_map(s, i, n_r):
        return (jnp.minimum(s * k_steps + i, total_blocks - 1), 0)

    partials = pl.pallas_call(
        kernel,
        out_shape=jax.ShapeDtypeStruct((nsplit * _SUBLANES, _LANES), jnp.float32),
        grid_spec=pltpu.PrefetchScalarGridSpec(
            num_scalar_prefetch=1,
            grid=(nsplit, k_steps),
            in_specs=[pl.BlockSpec((tile_rows, _LANES), in_map)] * len(inputs_2d),
            out_specs=pl.BlockSpec((_SUBLANES, _LANES), lambda s, i, n_r: (s, 0)),
            scratch_shapes=[pltpu.VMEM((acc_rows, _LANES), jnp.float32)],
        ),
        # TODO(synk): verify "parallel" shards the split axis across both v7x
        # TensorCores; if not, switch to pltpu.CORE_PARALLEL / pl.core_map.
        compiler_params=pltpu.CompilerParams(
            dimension_semantics=("parallel", "arbitrary"),
            vmem_limit_bytes=_VMEM_LIMIT,
        ),
    )(jnp.array([n], dtype=jnp.int32), *inputs_2d)

    return (jnp.sum(partials) / n).astype(jnp.float32)


@jax.jit
def _gan_loss_tensor(y, label):
    assert y.shape == label.shape
    n = y.size
    assert n > 0
    assert n + 2 * _MAX_TILE_ROWS * _LANES < 2 ** 31, "int32 element indexing"
    y2, rows = _to_lane_slab(y)
    t2, _ = _to_lane_slab(label)
    return _launch(_bce_kernel, [y2, t2], rows, n, _NSPLIT)


@functools.partial(jax.jit, static_argnames=("label",))
def _gan_loss_const(y, label):
    # Constant broadcast target (all-real / all-fake): single HBM stream.
    n = y.size
    assert n > 0
    assert n + 2 * _MAX_TILE_ROWS * _LANES < 2 ** 31, "int32 element indexing"
    y2, rows = _to_lane_slab(y)
    return _launch(_make_const_label_kernel(label), [y2], rows, n, _NSPLIT)


def gan_loss(y, label):
    """BCEWithLogitsLoss(y, label), mean reduction (PyTorch GAN_loss.forward)."""
    if isinstance(label, (int, float)) and not isinstance(label, bool):
        return _gan_loss_const(y, float(label))
    return _gan_loss_tensor(y, label)


if __name__ == "__main__":
    key = jax.random.PRNGKey(0)
    k1, k2 = jax.random.split(key)

    # Small discriminator-logit-shaped inputs: (batch, channels, H, W).
    shape = (2, 4, 16, 16)
    y = jax.random.normal(k1, shape, dtype=jnp.float32)
    label = jax.random.uniform(k2, shape, dtype=jnp.float32)

    out = gan_loss(y, label)
    jax.block_until_ready(out)
    ref = jnp.mean(jnp.maximum(y, 0.0) - y * label + jnp.log1p(jnp.exp(-jnp.abs(y))))
    assert jnp.allclose(out, ref, rtol=1e-5, atol=1e-5), (out, ref)

    # Constant-label fast path (e.g. all-"fake" targets of 0.9): one HBM stream.
    out_c = gan_loss(y, 0.9)
    jax.block_until_ready(out_c)
    ref_c = jnp.mean(jnp.maximum(y, 0.0) - y * 0.9 + jnp.log1p(jnp.exp(-jnp.abs(y))))
    assert jnp.allclose(out_c, ref_c, rtol=1e-5, atol=1e-5), (out_c, ref_c)

    # Ragged size: exercises the lane-tail pad + in-kernel boundary mask path.
    y_odd = jax.random.normal(k1, (3, 5, 7, 11), dtype=jnp.float32)
    t_odd = jax.random.uniform(k2, (3, 5, 7, 11), dtype=jnp.float32)
    out_o = gan_loss(y_odd, t_odd)
    jax.block_until_ready(out_o)
    ref_o = jnp.mean(jnp.maximum(y_odd, 0.0) - y_odd * t_odd
                     + jnp.log1p(jnp.exp(-jnp.abs(y_odd))))
    assert jnp.allclose(out_o, ref_o, rtol=1e-5, atol=1e-5), (out_o, ref_o)

    print("KERNEL_OK")
</pallas_src>

<mosaic_0001>
module attributes {stable_mosaic.version = 11 : i64} {
  func.func @_bce_kernel(%arg0: i32, %arg1: i32, %arg2: memref<1xi32, #tpu.memory_space<smem>>, %arg3: memref<16x128xf32, #tpu.memory_space<vmem>>, %arg4: memref<16x128xf32, #tpu.memory_space<vmem>>, %arg5: memref<8x128xf32, #tpu.memory_space<vmem>>, %arg6: memref<16x128xf32, #tpu.memory_space<vmem>>) attributes {dimension_semantics = [#tpu.dimension_semantics<parallel>, #tpu.dimension_semantics<arbitrary>], iteration_bounds = array<i64: 1, 1>, scalar_prefetch = 1 : i64, scratch_operands = 1 : i64, tpu.core_type = #tpu.core_type<tc>, window_params = [{transform_indices = @transform_0, window_bounds = array<i64: 16, 128>}, {transform_indices = @transform_1, window_bounds = array<i64: 16, 128>}, {transform_indices = @transform_2, window_bounds = array<i64: 8, 128>}]} {
    %c0 = arith.constant 0 : index
    %c0_0 = arith.constant 0 : index
    %0 = vector.load %arg3[%c0, %c0_0] : memref<16x128xf32, #tpu.memory_space<vmem>>, vector<16x128xf32>
    %c0_1 = arith.constant 0 : index
    %c0_2 = arith.constant 0 : index
    %1 = vector.load %arg4[%c0_1, %c0_2] : memref<16x128xf32, #tpu.memory_space<vmem>>, vector<16x128xf32>
    %cst = arith.constant 0.000000e+00 : f32
    %2 = vector.broadcast %cst : f32 to vector<16x128xf32>
    %3 = arith.maximumf %0, %2 : vector<16x128xf32>
    %4 = arith.mulf %0, %1 : vector<16x128xf32>
    %5 = arith.subf %3, %4 : vector<16x128xf32>
    %6 = math.absf %0 : vector<16x128xf32>
    %cst_3 = arith.constant 0.000000e+00 : f32
    %7 = vector.broadcast %cst_3 : f32 to vector<16x128xf32>
    %8 = arith.subf %7, %6 : vector<16x128xf32>
    %9 = math.exp %8 : vector<16x128xf32>
    %10 = math.log1p %9 : vector<16x128xf32>
    %11 = arith.addf %5, %10 : vector<16x128xf32>
    %c0_i32 = arith.constant 0 : i32
    %12 = arith.cmpi eq, %arg1, %c0_i32 : i32
    %13 = arith.extui %12 : i1 to i32
    %c0_i32_4 = arith.constant 0 : i32
    %14 = arith.cmpi ne, %13, %c0_i32_4 : i32
    scf.if %14 {
      %cst_12 = arith.constant 0.000000e+00 : f32
      %29 = vector.broadcast %cst_12 : f32 to vector<16x128xf32>
      %c0_13 = arith.constant 0 : index
      %c0_14 = arith.constant 0 : index
      %30 = vector.load %arg6[%c0_13, %c0_14] : memref<16x128xf32, #tpu.memory_space<vmem>>, vector<16x128xf32>
      tpu.vector_store %arg6[%c0_13, %c0_14], %29 {strides = array<i32>} : memref<16x128xf32, #tpu.memory_space<vmem>>, vector<16x128xf32>,
    } else {
    }
    %c1_i32 = arith.constant 1 : i32
    %15 = arith.muli %arg0, %c1_i32 : i32
    %16 = arith.addi %15, %arg1 : i32
    %c2048_i32 = arith.constant 2048 : i32
    %17 = arith.muli %16, %c2048_i32 : i32
    %c0_5 = arith.constant 0 : index
    %18 = memref.load %arg2[%c0_5] : memref<1xi32, #tpu.memory_space<smem>>
    %19 = arith.subi %18, %17 : i32
    %c2048_i32_6 = arith.constant 2048 : i32
    %20 = arith.cmpi sge, %19, %c2048_i32_6 : i32
    %21 = arith.extui %20 : i1 to i32
    %c0_i32_7 = arith.constant 0 : i32
    %22 = arith.cmpi ne, %21, %c0_i32_7 : i32
    scf.if %22 {
      %c0_12 = arith.constant 0 : index
      %c0_13 = arith.constant 0 : index
      %29 = vector.load %arg6[%c0_12, %c0_13] : memref<16x128xf32, #tpu.memory_space<vmem>>, vector<16x128xf32>
      %30 = vector.shape_cast %11 : vector<16x128xf32> to vector<1x16x128xf32>
      %cst_14 = arith.constant dense<0.000000e+00> : vector<16x128xf32>
      %31 = vector.multi_reduction <add>, %30, %cst_14 [0] : vector<1x16x128xf32> to vector<16x128xf32>
      %32 = arith.addf %29, %31 : vector<16x128xf32>
      %c0_15 = arith.constant 0 : index
      %c0_16 = arith.constant 0 : index
      %33 = vector.load %arg6[%c0_15, %c0_16] : memref<16x128xf32, #tpu.memory_space<vmem>>, vector<16x128xf32>
      tpu.vector_store %arg6[%c0_15, %c0_16], %32 {strides = array<i32>} : memref<16x128xf32, #tpu.memory_space<vmem>>, vector<16x128xf32>,
    } else {
    }
    %c2048_i32_8 = arith.constant 2048 : i32
    %23 = arith.cmpi slt, %19, %c2048_i32_8 : i32
    %24 = arith.extui %23 : i1 to i32
    %c0_i32_9 = arith.constant 0 : i32
    %25 = arith.cmpi ne, %24, %c0_i32_9 : i32
    scf.if %25 {
      %29 = tpu.iota {dimensions = array<i32: 0>} : vector<16x128xi32>
      %30 = tpu.iota {dimensions = array<i32: 1>} : vector<16x128xi32>
      %c128_i32 = arith.constant 128 : i32
      %31 = vector.broadcast %c128_i32 : i32 to vector<16x128xi32>
      %32 = arith.muli %29, %31 : vector<16x128xi32>
      %33 = arith.addi %32, %30 : vector<16x128xi32>
      %34 = vector.broadcast %19 : i32 to vector<16x128xi32>
      %35 = arith.cmpi slt, %33, %34 : vector<16x128xi32>
      %c0_12 = arith.constant 0 : index
      %c0_13 = arith.constant 0 : index
      %36 = vector.load %arg6[%c0_12, %c0_13] : memref<16x128xf32, #tpu.memory_space<vmem>>, vector<16x128xf32>
      %cst_14 = arith.constant 0.000000e+00 : f32
      %37 = vector.broadcast %cst_14 : f32 to vector<16x128xf32>
      %38 = arith.select %35, %11, %37 : vector<16x128xi1>, vector<16x128xf32>
      %39 = vector.shape_cast %38 : vector<16x128xf32> to vector<1x16x128xf32>
      %cst_15 = arith.constant dense<0.000000e+00> : vector<16x128xf32>
      %40 = vector.multi_reduction <add>, %39, %cst_15 [0] : vector<1x16x128xf32> to vector<16x128xf32>
      %41 = arith.addf %36, %40 : vector<16x128xf32>
      %c0_16 = arith.constant 0 : index
      %c0_17 = arith.constant 0 : index
      %42 = vector.load %arg6[%c0_16, %c0_17] : memref<16x128xf32, #tpu.memory_space<vmem>>, vector<16x128xf32>
      tpu.vector_store %arg6[%c0_16, %c0_17], %41 {strides = array<i32>} : memref<16x128xf32, #tpu.memory_space<vmem>>, vector<16x128xf32>,
    } else {
    }
    %c0_i32_10 = arith.constant 0 : i32
    %26 = arith.cmpi eq, %arg1, %c0_i32_10 : i32
    %27 = arith.extui %26 : i1 to i32
    %c0_i32_11 = arith.constant 0 : i32
    %28 = arith.cmpi ne, %27, %c0_i32_11 : i32
    scf.if %28 {
      %c0_12 = arith.constant 0 : index
      %c0_13 = arith.constant 0 : index
      %29 = vector.load %arg6[%c0_12, %c0_13] : memref<16x128xf32, #tpu.memory_space<vmem>>, vector<16x128xf32>
      %30 = vector.shape_cast %29 : vector<16x128xf32> to vector<2x8x128xf32>
      %cst_14 = arith.constant dense<0.000000e+00> : vector<8x128xf32>
      %31 = vector.multi_reduction <add>, %30, %cst_14 [0] : vector<2x8x128xf32> to vector<8x128xf32>
      %c0_15 = arith.constant 0 : index
      %c0_16 = arith.constant 0 : index
      %32 = vector.load %arg5[%c0_15, %c0_16] : memref<8x128xf32, #tpu.memory_space<vmem>>, vector<8x128xf32>
      tpu.vector_store %arg5[%c0_15, %c0_16], %31 {strides = array<i32>} : memref<8x128xf32, #tpu.memory_space<vmem>>, vector<8x128xf32>,
    } else {
    }
    return
  }
  func.func @transform_0(%arg0: i32, %arg1: i32, %arg2: memref<1xi32, #tpu.memory_space<smem>>) -> (i32, i32) {
    %c1_i32 = arith.constant 1 : i32
    %0 = arith.muli %arg0, %c1_i32 : i32
    %1 = arith.addi %0, %arg1 : i32
    %c0_i32 = arith.constant 0 : i32
    %2 = arith.minsi %1, %c0_i32 : i32
    %c0_i32_0 = arith.constant 0 : i32
    %c0_i32_1 = arith.constant 0 : i32
    return %2, %c0_i32_0 : i32, i32
  }
  func.func @transform_1(%arg0: i32, %arg1: i32, %arg2: memref<1xi32, #tpu.memory_space<smem>>) -> (i32, i32) {
    %c1_i32 = arith.constant 1 : i32
    %0 = arith.muli %arg0, %c1_i32 : i32
    %1 = arith.addi %0, %arg1 : i32
    %c0_i32 = arith.constant 0 : i32
    %2 = arith.minsi %1, %c0_i32 : i32
    %c0_i32_0 = arith.constant 0 : i32
    %c0_i32_1 = arith.constant 0 : i32
    return %2, %c0_i32_0 : i32, i32
  }
  func.func @transform_2(%arg0: i32, %arg1: i32, %arg2: memref<1xi32, #tpu.memory_space<smem>>) -> (i32, i32) {
    %c0_i32 = arith.constant 0 : i32
    %c0_i32_0 = arith.constant 0 : i32
    return %arg0, %c0_i32 : i32, i32
  }
}

</mosaic_0001>

<llo_original>
// kernel: _gan_loss_tensor.1
$region0: #{_gan_loss_tensor.1}
  #allocation0 [shape = 'u32[]', space=smem, size = 0x4, offset = 0x4, fixed_abs, tag = 'smem constant byte address 0x4 - core index']
  #allocation1 [shape = 'u32[72,128]{1,0:T(1,128)}', space=vmem, size = 0x9000, scoped, tag = 'internal scratch']
  #allocation2 [shape = 'f32[16,128]{1,0:T(8,128)}', space=vmem, size = 0x2000, scoped, tag = 'scratch operand']
  #allocation3 [shape = 's32[1]{0}', space=sflag, size = 0x4, scoped, tag = 'scoped memory for _gan_loss_tensor.1']
  #allocation4 [shape = 's32[1]{0:T(128)S(6)}', space=smem, size = 0x200, scoped, tag = 'prefetched SMEM operand 0']
  %s0 = inlined_call_operand.<no memory space> [shape: s32[1], index: 0, kind: input, shape index: {}]
  %s1 = inlined_call_operand.vmem [shape: f32[16,128], index: 1, kind: input, shape index: {}]
  %s2 = inlined_call_operand.vmem [shape: f32[16,128], index: 2, kind: input, shape index: {}]
  %s3 = inlined_call_operand.vmem [shape: f32[8,128], index: 3, kind: output, shape index: {}]
  %s4 = sld [smem:[#allocation0]]
  $region34: #{_gan_loss_tensor.1} parent=0
    _
  %s6 = ssub.s32 1, %s4
  %s7 = scalar_select 0, %s6, %s4
  %8 = sst [smem:[#allocation4]] %s0
  // Predicated region
  $region2: #{_gan_loss_tensor.1} parent=0 // pred_check
    _
  $region3: #{_gan_loss_tensor.1} parent=0 // pred_check_branch
    %10 = sbr.rel (0) target = $region5
  $region4: #{_gan_loss_tensor.1} parent=0 // pred_region
    %s11 = sadd.s32 0, 0
    %p12 = scmp.lt.s32.totalorder %s11, 0
    %s13 = scalar_select %p12, %s11, 0
    %s14 = smul.u32 2, %s13
    %p15 = scmp.lt.s32.totalorder %s14, 1
    %s16 = scalar_select %p15, %s14, 1
    %s17 = smul.addr %s16, 8
    %s18 = scalar_lea.vmem %s1, %s17
    %s19 = sadd.s32 0, 0
    %p20 = scmp.lt.s32.totalorder %s19, 0
    %s21 = scalar_select %p20, %s19, 0
    %s22 = smul.u32 2, %s21
  $region5: #{_gan_loss_tensor.1} parent=0 // pred_fallthru
    _
  // Predicated region
  $region6: #{_gan_loss_tensor.1} parent=0 // pred_check
    _
  $region7: #{_gan_loss_tensor.1} parent=0 // pred_check_branch
    %24 = sbr.rel (0) target = $region9
  $region8: #{_gan_loss_tensor.1} parent=0 // pred_region
    %s25 = sadd.s32 0, 0
    %p26 = scmp.lt.s32.totalorder %s25, 0
    %s27 = scalar_select %p26, %s25, 0
    %s28 = smul.u32 2, %s27
    %p29 = scmp.lt.s32.totalorder %s28, 1
    %s30 = scalar_select %p29, %s28, 1
    %s31 = smul.addr %s30, 8
    %s32 = scalar_lea.vmem %s2, %s31
    %s33 = sadd.s32 0, 0
    %p34 = scmp.lt.s32.totalorder %s33, 0
    %s35 = scalar_select %p34, %s33, 0
    %s36 = smul.u32 2, %s35
  $region9: #{_gan_loss_tensor.1} parent=0 // pred_fallthru
    _
  %s37 = sadd.s32 0, 0
  %p38 = scmp.lt.s32.totalorder %s37, 0
  %s39 = scalar_select %p38, %s37, 0
  %s40 = smul.u32 2, %s39
  %p41 = scmp.lt.s32.totalorder %s40, 1
  %s42 = scalar_select %p41, %s40, 1
  %s43 = smul.addr %s42, 8
  %s44 = scalar_lea.vmem %s1, %s43
  %s45 = sadd.s32 0, 0
  %p46 = scmp.lt.s32.totalorder %s45, 0
  %s47 = scalar_select %p46, %s45, 0
  %s48 = smul.u32 2, %s47
  %p49 = scmp.lt.s32.totalorder %s48, 1
  %s50 = scalar_select %p49, %s48, 1
  %s51 = smul.addr %s50, 8
  %s52 = scalar_lea.vmem %s2, %s51
  %s53 = sadd.s32 0, 0
  %p54 = scmp.lt.s32.totalorder %s53, 0
  %s55 = scalar_select %p54, %s53, 0
  %s56 = smul.u32 2, %s55
  %p57 = scmp.lt.s32.totalorder %s56, 1
  %s58 = scalar_select %p57, %s56, 1
  %s59 = smul.addr %s58, 8
  %s60 = scalar_lea.vmem %s1, %s59
  %s61 = sadd.s32 0, 0
  %p62 = scmp.lt.s32.totalorder %s61, 0
  %s63 = scalar_select %p62, %s61, 0
  %s64 = smul.u32 2, %s63
  %s65 = sadd.s32 0, 0
  %p66 = scmp.lt.s32.totalorder %s65, 0
  %s67 = scalar_select %p66, %s65, 0
  %s68 = smul.u32 2, %s67
  %p69 = scmp.lt.s32.totalorder %s68, 1
  %s70 = scalar_select %p69, %s68, 1
  %s71 = smul.addr %s70, 8
  %s72 = scalar_lea.vmem %s2, %s71
  %s73 = sadd.s32 0, 0
  %p74 = scmp.lt.s32.totalorder %s73, 0
  %s75 = scalar_select %p74, %s73, 0
  %s76 = smul.u32 2, %s75
  %v77 = vld [vmem:[%s60] sm:$0xff]
  %v78 = vld [vmem:[%s60 + $0x8] sm:$0xff]
  %v79 = vld [vmem:[%s72] sm:$0xff]
  %v80 = vld [vmem:[%s72 + $0x8] sm:$0xff]
  %v81 = vmax.f32 %v77, 0.0
  %v82 = vmax.f32 %v78, 0.0
  %v83 = vmul.f32 %v77, %v79
  %v84 = vmul.f32 %v78, %v80
  %v85 = vsub.f32 %v81, %v83
  %v86 = vsub.f32 %v82, %v84
  %v87 = vand.u32 2147483647, %v77
  %v88 = vand.u32 2147483647, %v78
  %v89 = vsub.f32 0.0, %v87
  %v90 = vsub.f32 0.0, %v88
  %v91 = vmul.f32 %v89, 1.442695
  %v92 = vpow.pop %v91
  %v93 = vmul.f32 %v90, 1.442695
  %v94 = vpow.pop %v93
  %v95 = vadd.f32 %v92, 1.0
  %v96 = vlog2.pop %v95
  %v97 = vmul.f32 %v96, 0.6931472
  %v98 = vmul.f32 -0.5, %v92
  %v99 = vadd.f32 %v98, 1.0
  %v100 = vmul.f32 %v99, %v92
  %v101 = vand.u32 2147483647, %v92
  %vm102 = vcmp.lt.f32.partialorder %v101, 0.0004427343
  %v103 = vsel %vm102, %v100, %v97
  %v104 = vadd.f32 %v94, 1.0
  %v105 = vlog2.pop %v104
  %v106 = vmul.f32 %v105, 0.6931472
  %v107 = vmul.f32 -0.5, %v94
  %v108 = vadd.f32 %v107, 1.0
  %v109 = vmul.f32 %v108, %v94
  %v110 = vand.u32 2147483647, %v94
  %vm111 = vcmp.lt.f32.partialorder %v110, 0.0004427343
  %v112 = vsel %vm111, %v109, %v106
  %v113 = vadd.f32 %v85, %v103
  %v114 = vadd.f32 %v86, %v112
  %p115 = scmp.eq.s32.totalorder 0, 0
  // Predicated region
  $region10: #{_gan_loss_tensor.1} parent=0 // pred_check
    %p116 = pneg %p115
  $region11: #{_gan_loss_tensor.1} parent=0 // pred_check_branch
    %118 = sbr.rel (%p116) target = $region13
  $region12: #{_gan_loss_tensor.1} parent=0 // pred_region
    %119 = vst [vmem:[#allocation2] sm:$0xff] 0.0
    %120 = vst [vmem:[#allocation2 + $0x8] sm:$0xff] 0.0
  $region13: #{_gan_loss_tensor.1} parent=0 // pred_fallthru
    _
  %s121 = sadd.s32 0, 0
  %s122 = smul.u32 %s121, 2048
  %s123 = sld [smem:[#allocation4]]
  %s124 = ssub.s32 %s123, %s122
  %p125 = scmp.ge.s32.totalorder %s124, 2048
  // Predicated region
  $region14: #{_gan_loss_tensor.1} parent=0 // pred_check
    %p126 = pneg %p125
  $region15: #{_gan_loss_tensor.1} parent=0 // pred_check_branch
    %128 = sbr.rel (%p126) target = $region17
  $region16: #{_gan_loss_tensor.1} parent=0 // pred_region
    %v129 = vld [vmem:[#allocation2] sm:$0xff]
    %v130 = vld [vmem:[#allocation2 + $0x8] sm:$0xff]
    %v131 = vadd.f32 %v113, 0.0
    %v132 = vadd.f32 %v114, 0.0
    %v133 = vadd.f32 %v129, %v131
    %v134 = vadd.f32 %v130, %v132
    %135 = vst [vmem:[#allocation2] sm:$0xff] %v133
    %136 = vst [vmem:[#allocation2 + $0x8] sm:$0xff] %v134
  $region17: #{_gan_loss_tensor.1} parent=0 // pred_fallthru
    _
  %p137 = scmp.lt.s32.totalorder %s124, 2048
  // Predicated region
  $region18: #{_gan_loss_tensor.1} parent=0 // pred_check
    %p138 = pneg %p137
  $region19: #{_gan_loss_tensor.1} parent=0 // pred_check_branch
    %140 = sbr.rel (%p138) target = $region21
  $region20: #{_gan_loss_tensor.1} parent=0 // pred_region
    %v141 = vlaneseq
    %v142 = vshrl.u32 %v141, 7
    %v143 = vadd.s32 %v142, 8
    %v144 = vlaneseq
    %v145 = vand.u32 %v144, 127
    %v146 = vmul.u32 %v142, 128
    %v147 = vmul.u32 %v143, 128
    %v148 = vadd.s32 %v146, %v145
    %v149 = vadd.s32 %v147, %v145
    %v150 = vstv %s124
    %vm151 = vcmp.lt.s32.totalorder %v148, %v150
    %vm152 = vcmp.lt.s32.totalorder %v149, %v150
    %v153 = vld [vmem:[#allocation2] sm:$0xff]
    %v154 = vld [vmem:[#allocation2 + $0x8] sm:$0xff]
    %v155 = vsel %vm151, %v113, 0.0
    %v156 = vsel %vm152, %v114, 0.0
    %v157 = vadd.f32 %v155, 0.0
    %v158 = vadd.f32 %v156, 0.0
    %v159 = vadd.f32 %v153, %v157
    %v160 = vadd.f32 %v154, %v158
    %161 = vst [vmem:[#allocation2] sm:$0xff] %v159
    %162 = vst [vmem:[#allocation2 + $0x8] sm:$0xff] %v160
  $region21: #{_gan_loss_tensor.1} parent=0 // pred_fallthru
    _
  // Predicated region
  $region22: #{_gan_loss_tensor.1} parent=0 // pred_check
    %p163 = pneg %p115
  $region23: #{_gan_loss_tensor.1} parent=0 // pred_check_branch
    %165 = sbr.rel (%p163) target = $region25
  $region24: #{_gan_loss_tensor.1} parent=0 // pred_region
    %v166 = vld [vmem:[#allocation2] sm:$0xff]
    %v167 = vld [vmem:[#allocation2 + $0x8] sm:$0xff]
    %v168 = vadd.f32 %v166, %v167
    %169 = vst [vmem:[%s3] sm:$0xff] %v168
  $region25: #{_gan_loss_tensor.1} parent=0 // pred_fallthru
    _
  // Predicated region
  $region26: #{_gan_loss_tensor.1} parent=0 // pred_check
    _
  $region27: #{_gan_loss_tensor.1} parent=0 // pred_check_branch
    %171 = sbr.rel (0) target = $region29
  $region28: #{_gan_loss_tensor.1} parent=0 // pred_region
    _
  $region29: #{_gan_loss_tensor.1} parent=0 // pred_fallthru
    _
  // Predicated region
  $region30: #{_gan_loss_tensor.1} parent=0 // pred_check
    _
  $region31: #{_gan_loss_tensor.1} parent=0 // pred_check_branch
    %173 = sbr.rel (0) target = $region33
  $region32: #{_gan_loss_tensor.1} parent=0 // pred_region
    _
  $region33: #{_gan_loss_tensor.1} parent=0 // pred_fallthru
    _

</llo_original>
